<compile_context>
chip_gen: v7x
topology: tpu7x:2x2x1
jax: 0.10.0
libtpu: 0.0.40
codegen_flags: <defaults>
</compile_context>

<pallas_src>
import jax
import jax.numpy as jnp
from jax.experimental import pallas as pl
from jax.experimental.pallas import tpu as pltpu


def _make_fp_kernel(num_layers):
    def kernel(*refs):
        u_t_ref, known_ref, ufeat_ref, kfeat_ref = refs[0:4]
        w0a_ref, w0b_ref, sh0_ref = refs[4:7]
        tail = refs[7:]
        mlp_refs = tail[:2 * (num_layers - 1)]
        out_ref = tail[2 * (num_layers - 1)]

        u_t = u_t_ref[...]            # (3, tn)  xyz of unknown points, n on lanes
        k = known_ref[...]            # (m, 3)   xyz of known points

        # squared distances d^T (m, tn): direct difference form on the VPU.
        # No MXU use, no ||.||^2 cancellation, matches the reference bit-closely.
        d = ((k[:, 0:1] - u_t[0:1, :]) ** 2
             + (k[:, 1:2] - u_t[1:2, :]) ** 2
             + (k[:, 2:3] - u_t[2:3, :]) ** 2)                           # (m, tn) f32

        # iteratively extract the 3 nearest neighbours; one cross-sublane min per
        # iteration, one-hot via equality with the exact f32 minimum.
        dcur = d
        s_un = jnp.zeros_like(d)                       # unnormalized S^T (m, tn)
        norm = jnp.zeros((1, d.shape[1]), jnp.float32)
        for _ in range(3):
            dmin = jnp.min(dcur, axis=0, keepdims=True)                  # (1, tn)
            hit = dcur == dmin                                           # (m, tn)
            w = pl.reciprocal(dmin + 1e-8, approx=True)                  # (1, tn)
            s_un = s_un + jnp.where(hit, w, 0.0)
            norm = norm + w
            dcur = jnp.where(hit, 1e30, dcur)

        inv_norm = pl.reciprocal(norm, approx=True)                      # (1, tn)

        # three_interpolate: bf16 MXU matmul, then scale the small result
        # (dot is linear in S, so (kfeat @ S_un) * 1/norm == kfeat @ (S_un/norm)).
        interp = jnp.dot(kfeat_ref[...], s_un.astype(jnp.bfloat16),
                         preferred_element_type=jnp.float32) * inv_norm  # (C2, tn)

        # concat-free first MLP layer: split weight applied to interp and ufeat.
        x = (jnp.dot(w0a_ref[...], interp.astype(jnp.bfloat16),
                     preferred_element_type=jnp.float32)
             + jnp.dot(w0b_ref[...], ufeat_ref[...],
                       preferred_element_type=jnp.float32))
        x = jnp.maximum(x + sh0_ref[...], 0.0)

        # remaining shared-MLP layers (BN scale pre-folded into W) + shift + ReLU
        for layer in range(num_layers - 1):
            w_t = mlp_refs[2 * layer][...]       # (Cout, Cin) bf16
            sh = mlp_refs[2 * layer + 1][...]    # (Cout, 1)   f32
            x = jnp.dot(w_t, x.astype(jnp.bfloat16),
                        preferred_element_type=jnp.float32)
            x = jnp.maximum(x + sh, 0.0)

        out_ref[...] = x.astype(out_ref.dtype)

    return kernel


def pointnet_fp_module(unknown, known, unknow_feats, known_feats, mlp_params,
                       *, n_tile=512, out_dtype=jnp.float32):
    """Pallas feature-propagation forward (the `known is not None` path).

    unknown:       (B, n, 3)   float32
    known:         (B, m, 3)   float32
    unknow_feats:  (B, C1, n)  float32
    known_feats:   (B, C2, m)  float32
    mlp_params: list of (W (Cin, Cout), scale (1, Cout), shift (1, Cout))
    returns (B, mlp[-1], n) in out_dtype (pass bf16 to halve HBM writeback)
    """
    B, n, _ = unknown.shape
    m = known.shape[1]
    C1 = unknow_feats.shape[1]
    C2 = known_feats.shape[1]
    cout = mlp_params[-1][0].shape[1]
    num_layers = len(mlp_params)

    # cap the lane tile so a handful of live (m, tn) f32 intermediates plus
    # double-buffered IO stay well under v7x's 64 MiB (32 MiB default scoped) VMEM
    vmem_budget_bytes = 24 * 1024 * 1024
    tn_cap = max(128, (vmem_budget_bytes // (8 * 4 * m)) // 128 * 128)
    tn = min(n_tile, tn_cap)

    # lane-dense tiling: pad n up to a multiple of 128 / of the tile and slice
    # the padding off the output, instead of a giant un-pipelined tn=n fallback.
    if n < tn:
        tn = ((n + 127) // 128) * 128
    n_pad = ((n + tn - 1) // tn) * tn
    pad = n_pad - n

    # only the tiny xyz array is transposed; features stay (B, C, n)/(B, C, m)
    unknown_t = jnp.transpose(unknown, (0, 2, 1))          # (B, 3, n)
    if pad:
        unknown_t = jnp.pad(unknown_t, ((0, 0), (0, 0), (0, pad)))
        unknow_feats = jnp.pad(unknow_feats, ((0, 0), (0, 0), (0, pad)))

    # bf16 matmul operands (MXU-native on v5e/v6e/v7x); NN math stays f32.
    ufeat_b = unknow_feats.astype(jnp.bfloat16)
    kfeat_b = known_feats.astype(jnp.bfloat16)

    # fold eval-mode BN scale into the conv weight, transpose to (Cout, Cin),
    # split the first layer's weight along Cin = [C2 interp | C1 ufeat].
    flat_params = []
    param_specs = []
    for li, (w, sc, sh) in enumerate(mlp_params):
        w_eff = jnp.transpose(w * sc).astype(jnp.bfloat16)   # (Cout, Cin)
        sh_eff = jnp.transpose(sh).astype(jnp.float32)       # (Cout, 1)
        if li == 0:
            parts = (w_eff[:, :C2], w_eff[:, C2:], sh_eff)
        else:
            parts = (w_eff, sh_eff)
        for p in parts:
            flat_params.append(p)
            param_specs.append(pl.BlockSpec(p.shape, lambda b, t: (0, 0)))

    # known / known_feats / weights have constant block indices across the inner
    # t axis, so Pallas keeps them resident (no re-DMA between consecutive tiles).
    in_specs = [
        pl.BlockSpec((pl.Squeezed(), 3, tn), lambda b, t: (b, 0, t)),    # unknown_t
        pl.BlockSpec((pl.Squeezed(), m, 3), lambda b, t: (b, 0, 0)),     # known
        pl.BlockSpec((pl.Squeezed(), C1, tn), lambda b, t: (b, 0, t)),   # unknow_feats (bf16)
        pl.BlockSpec((pl.Squeezed(), C2, m), lambda b, t: (b, 0, 0)),    # known_feats (bf16)
    ] + param_specs

    out = pl.pallas_call(
        _make_fp_kernel(num_layers),
        grid=(B, n_pad // tn),
        in_specs=in_specs,
        out_specs=pl.BlockSpec((pl.Squeezed(), cout, tn), lambda b, t: (b, 0, t)),
        out_shape=jax.ShapeDtypeStruct((B, cout, n_pad), out_dtype),
        compiler_params=pltpu.CompilerParams(
            dimension_semantics=("parallel", "parallel"),
            vmem_limit_bytes=48 * 1024 * 1024),
    )(unknown_t, known, ufeat_b, kfeat_b, *flat_params)

    return out[:, :, :n] if pad else out   # already (B, mlp[-1], n)


def init_mlp_params(key, mlp, eps=1e-5):
    """Deterministic Conv2d(1x1, bias=False) + BatchNorm2d params, BN folded to scale/shift."""
    params = []
    for k in range(len(mlp) - 1):
        key, kw, kg, kb = jax.random.split(key, 4)
        cin, cout = mlp[k], mlp[k + 1]
        w = 0.2 * jax.random.normal(kw, (cin, cout), jnp.float32)          # conv weight (Cin, Cout)
        gamma = 1.0 + 0.1 * jax.random.normal(kg, (1, cout), jnp.float32)  # BN weight
        beta = 0.1 * jax.random.normal(kb, (1, cout), jnp.float32)         # BN bias
        running_mean = jnp.zeros((1, cout), jnp.float32)
        running_var = jnp.ones((1, cout), jnp.float32)
        scale = gamma / jnp.sqrt(running_var + eps)
        shift = beta - running_mean * scale
        params.append((w, scale, shift))
    return params


def reference(unknown, known, unknow_feats, known_feats, mlp_params):
    """Pure-JAX reference mirroring the PyTorch module semantics (f32, exact div)."""
    m = known.shape[1]
    d = jnp.sum((unknown[:, :, None, :] - known[:, None, :, :]) ** 2, axis=-1)  # (B, n, m)
    iota = jnp.arange(m, dtype=jnp.int32)[None, None, :]
    dcur = d
    recips, onehots = [], []
    for _ in range(3):
        dmin = jnp.min(dcur, axis=2, keepdims=True)
        eq = dcur == dmin
        idx = jnp.min(jnp.where(eq, iota, m), axis=2, keepdims=True)
        hit = iota == idx
        onehots.append(hit.astype(jnp.float32))
        recips.append(1.0 / (dmin + 1e-8))
        dcur = jnp.where(hit, 1e30, dcur)
    norm = recips[0] + recips[1] + recips[2]
    S = sum((r / norm) * oh for r, oh in zip(recips, onehots))                  # (B, n, m)
    kfeat_t = jnp.transpose(known_feats, (0, 2, 1))
    interp = jnp.einsum('bnm,bmc->bnc', S, kfeat_t)
    x = jnp.concatenate([interp, jnp.transpose(unknow_feats, (0, 2, 1))], axis=2)
    for w, sc, sh in mlp_params:
        x = jnp.einsum('bnc,cd->bnd', x, w)
        x = jnp.maximum(x * sc + sh, 0.0)
    return jnp.transpose(x, (0, 2, 1))


if __name__ == "__main__":
    B, n, m, C1, C2 = 2, 128, 64, 6, 10
    mlp = [C1 + C2, 32, 24]

    key = jax.random.PRNGKey(0)
    k1, k2, k3, k4, kp = jax.random.split(key, 5)
    unknown = jax.random.uniform(k1, (B, n, 3), jnp.float32)
    known = jax.random.uniform(k2, (B, m, 3), jnp.float32)
    unknow_feats = jax.random.normal(k3, (B, C1, n), jnp.float32)
    known_feats = jax.random.normal(k4, (B, C2, m), jnp.float32)
    params = init_mlp_params(kp, mlp)

    out = pointnet_fp_module(unknown, known, unknow_feats, known_feats, params)
    out = jax.block_until_ready(out)
    assert out.shape == (B, mlp[-1], n), out.shape

    ref = reference(unknown, known, unknow_feats, known_feats, params)
    max_err = float(jnp.max(jnp.abs(out - ref)))
    assert jnp.allclose(out, ref, rtol=5e-2, atol=5e-2), max_err

    print("KERNEL_OK")
</pallas_src>

<mosaic_0001>
module attributes {stable_mosaic.version = 11 : i64} {
  func.func @kernel(%arg0: i32, %arg1: i32, %arg2: memref<1x3x128xf32, #tpu.memory_space<vmem>>, %arg3: memref<1x64x3xf32, #tpu.memory_space<vmem>>, %arg4: memref<1x6x128xbf16, #tpu.memory_space<vmem>>, %arg5: memref<1x10x64xbf16, #tpu.memory_space<vmem>>, %arg6: memref<32x10xbf16, #tpu.memory_space<vmem>>, %arg7: memref<32x6xbf16, #tpu.memory_space<vmem>>, %arg8: memref<32x1xf32, #tpu.memory_space<vmem>>, %arg9: memref<24x32xbf16, #tpu.memory_space<vmem>>, %arg10: memref<24x1xf32, #tpu.memory_space<vmem>>, %arg11: memref<1x24x128xf32, #tpu.memory_space<vmem>>) attributes {dimension_semantics = [#tpu.dimension_semantics<parallel>, #tpu.dimension_semantics<parallel>], iteration_bounds = array<i64: 2, 1>, scalar_prefetch = 0 : i64, scratch_operands = 0 : i64, tpu.core_type = #tpu.core_type<tc>, window_params = [{transform_indices = @transform_0, window_bounds = array<i64: 1, 3, 128>}, {transform_indices = @transform_1, window_bounds = array<i64: 1, 64, 3>}, {transform_indices = @transform_2, window_bounds = array<i64: 1, 6, 128>}, {transform_indices = @transform_3, window_bounds = array<i64: 1, 10, 64>}, {pipeline_mode = #tpu.pipeline_mode<synchronous>, transform_indices = @transform_4, window_bounds = array<i64: 32, 10>}, {pipeline_mode = #tpu.pipeline_mode<synchronous>, transform_indices = @transform_5, window_bounds = array<i64: 32, 6>}, {pipeline_mode = #tpu.pipeline_mode<synchronous>, transform_indices = @transform_6, window_bounds = array<i64: 32, 1>}, {pipeline_mode = #tpu.pipeline_mode<synchronous>, transform_indices = @transform_7, window_bounds = array<i64: 24, 32>}, {pipeline_mode = #tpu.pipeline_mode<synchronous>, transform_indices = @transform_8, window_bounds = array<i64: 24, 1>}, {transform_indices = @transform_9, window_bounds = array<i64: 1, 24, 128>}]} {
    %c0 = arith.constant 0 : index
    %c0_0 = arith.constant 0 : index
    %c0_1 = arith.constant 0 : index
    %0 = vector.load %arg2[%c0, %c0_0, %c0_1] : memref<1x3x128xf32, #tpu.memory_space<vmem>>, vector<1x3x128xf32>
    %1 = vector.shape_cast %0 : vector<1x3x128xf32> to vector<3x128xf32>
    %c0_2 = arith.constant 0 : index
    %c0_3 = arith.constant 0 : index
    %c0_4 = arith.constant 0 : index
    %2 = vector.load %arg3[%c0_2, %c0_3, %c0_4] : memref<1x64x3xf32, #tpu.memory_space<vmem>>, vector<1x64x3xf32>
    %3 = vector.shape_cast %2 : vector<1x64x3xf32> to vector<64x3xf32>
    %4 = vector.extract_strided_slice %3 {offsets = [0, 0], sizes = [64, 1], strides = [1, 1]} : vector<64x3xf32> to vector<64x1xf32>
    %5 = vector.extract_strided_slice %1 {offsets = [0, 0], sizes = [1, 128], strides = [1, 1]} : vector<3x128xf32> to vector<1x128xf32>
    %6 = vector.broadcast %4 : vector<64x1xf32> to vector<64x128xf32>
    %7 = vector.broadcast %5 : vector<1x128xf32> to vector<64x128xf32>
    %8 = arith.subf %6, %7 : vector<64x128xf32>
    %9 = arith.mulf %8, %8 : vector<64x128xf32>
    %10 = vector.extract_strided_slice %3 {offsets = [0, 1], sizes = [64, 1], strides = [1, 1]} : vector<64x3xf32> to vector<64x1xf32>
    %11 = vector.extract_strided_slice %1 {offsets = [1, 0], sizes = [1, 128], strides = [1, 1]} : vector<3x128xf32> to vector<1x128xf32>
    %12 = vector.broadcast %10 : vector<64x1xf32> to vector<64x128xf32>
    %13 = vector.broadcast %11 : vector<1x128xf32> to vector<64x128xf32>
    %14 = arith.subf %12, %13 : vector<64x128xf32>
    %15 = arith.mulf %14, %14 : vector<64x128xf32>
    %16 = arith.addf %9, %15 : vector<64x128xf32>
    %17 = vector.extract_strided_slice %3 {offsets = [0, 2], sizes = [64, 1], strides = [1, 1]} : vector<64x3xf32> to vector<64x1xf32>
    %18 = vector.extract_strided_slice %1 {offsets = [2, 0], sizes = [1, 128], strides = [1, 1]} : vector<3x128xf32> to vector<1x128xf32>
    %19 = vector.broadcast %17 : vector<64x1xf32> to vector<64x128xf32>
    %20 = vector.broadcast %18 : vector<1x128xf32> to vector<64x128xf32>
    %21 = arith.subf %19, %20 : vector<64x128xf32>
    %22 = arith.mulf %21, %21 : vector<64x128xf32>
    %23 = arith.addf %16, %22 : vector<64x128xf32>
    %cst = arith.constant 0.000000e+00 : f32
    %24 = vector.broadcast %cst : f32 to vector<64x128xf32>
    %cst_5 = arith.constant 0.000000e+00 : f32
    %25 = vector.broadcast %cst_5 : f32 to vector<1x128xf32>
    %cst_6 = arith.constant dense<0x7F800000> : vector<128xf32>
    %26 = vector.multi_reduction <minimumf>, %23, %cst_6 [0] : vector<64x128xf32> to vector<128xf32>
    %27 = vector.shape_cast %26 : vector<128xf32> to vector<1x128xf32>
    %28 = vector.broadcast %27 : vector<1x128xf32> to vector<64x128xf32>
    %29 = arith.cmpf oeq, %23, %28 : vector<64x128xf32>
    %cst_7 = arith.constant 9.99999993E-9 : f32
    %30 = vector.broadcast %cst_7 : f32 to vector<1x128xf32>
    %31 = arith.addf %27, %30 : vector<1x128xf32>
    %32 = tpu.reciprocal %31 {approx = true} : vector<1x128xf32> -> vector<1x128xf32>
    %cst_8 = arith.constant 0.000000e+00 : f32
    %33 = vector.shape_cast %32 : vector<1x128xf32> to vector<1x128xf32>
    %34 = vector.broadcast %33 : vector<1x128xf32> to vector<64x128xf32>
    %35 = vector.broadcast %cst_8 : f32 to vector<64x128xf32>
    %36 = arith.select %29, %34, %35 : vector<64x128xi1>, vector<64x128xf32>
    %37 = arith.addf %24, %36 : vector<64x128xf32>
    %38 = arith.addf %25, %32 : vector<1x128xf32>
    %cst_9 = arith.constant 1.000000e+30 : f32
    %39 = vector.broadcast %cst_9 : f32 to vector<64x128xf32>
    %40 = arith.select %29, %39, %23 : vector<64x128xi1>, vector<64x128xf32>
    %cst_10 = arith.constant dense<0x7F800000> : vector<128xf32>
    %41 = vector.multi_reduction <minimumf>, %40, %cst_10 [0] : vector<64x128xf32> to vector<128xf32>
    %42 = vector.shape_cast %41 : vector<128xf32> to vector<1x128xf32>
    %43 = vector.broadcast %42 : vector<1x128xf32> to vector<64x128xf32>
    %44 = arith.cmpf oeq, %40, %43 : vector<64x128xf32>
    %cst_11 = arith.constant 9.99999993E-9 : f32
    %45 = vector.broadcast %cst_11 : f32 to vector<1x128xf32>
    %46 = arith.addf %42, %45 : vector<1x128xf32>
    %47 = tpu.reciprocal %46 {approx = true} : vector<1x128xf32> -> vector<1x128xf32>
    %cst_12 = arith.constant 0.000000e+00 : f32
    %48 = vector.shape_cast %47 : vector<1x128xf32> to vector<1x128xf32>
    %49 = vector.broadcast %48 : vector<1x128xf32> to vector<64x128xf32>
    %50 = vector.broadcast %cst_12 : f32 to vector<64x128xf32>
    %51 = arith.select %44, %49, %50 : vector<64x128xi1>, vector<64x128xf32>
    %52 = arith.addf %37, %51 : vector<64x128xf32>
    %53 = arith.addf %38, %47 : vector<1x128xf32>
    %cst_13 = arith.constant 1.000000e+30 : f32
    %54 = vector.broadcast %cst_13 : f32 to vector<64x128xf32>
    %55 = arith.select %44, %54, %40 : vector<64x128xi1>, vector<64x128xf32>
    %cst_14 = arith.constant dense<0x7F800000> : vector<128xf32>
    %56 = vector.multi_reduction <minimumf>, %55, %cst_14 [0] : vector<64x128xf32> to vector<128xf32>
    %57 = vector.shape_cast %56 : vector<128xf32> to vector<1x128xf32>
    %58 = vector.broadcast %57 : vector<1x128xf32> to vector<64x128xf32>
    %59 = arith.cmpf oeq, %55, %58 : vector<64x128xf32>
    %cst_15 = arith.constant 9.99999993E-9 : f32
    %60 = vector.broadcast %cst_15 : f32 to vector<1x128xf32>
    %61 = arith.addf %57, %60 : vector<1x128xf32>
    %62 = tpu.reciprocal %61 {approx = true} : vector<1x128xf32> -> vector<1x128xf32>
    %cst_16 = arith.constant 0.000000e+00 : f32
    %63 = vector.shape_cast %62 : vector<1x128xf32> to vector<1x128xf32>
    %64 = vector.broadcast %63 : vector<1x128xf32> to vector<64x128xf32>
    %65 = vector.broadcast %cst_16 : f32 to vector<64x128xf32>
    %66 = arith.select %59, %64, %65 : vector<64x128xi1>, vector<64x128xf32>
    %67 = arith.addf %52, %66 : vector<64x128xf32>
    %68 = arith.addf %53, %62 : vector<1x128xf32>
    %69 = tpu.reciprocal %68 {approx = true} : vector<1x128xf32> -> vector<1x128xf32>
    %c0_17 = arith.constant 0 : index
    %c0_18 = arith.constant 0 : index
    %c0_19 = arith.constant 0 : index
    %70 = vector.load %arg5[%c0_17, %c0_18, %c0_19] : memref<1x10x64xbf16, #tpu.memory_space<vmem>>, vector<1x10x64xbf16>
    %71 = vector.shape_cast %70 : vector<1x10x64xbf16> to vector<10x64xbf16>
    %72 = arith.truncf %67 : vector<64x128xf32> to vector<64x128xbf16>
    %cst_20 = arith.constant dense<0.000000e+00> : vector<10x128xf32>
    %73 = tpu.matmul %71, %72, %cst_20 {dimension_numbers = #tpu.dot_dimension_numbers<[1], [0], [0], [1], [0, 0, 1, 1], [], []>} : vector<10x64xbf16>, vector<64x128xbf16>, vector<10x128xf32> -> vector<10x128xf32>
    %74 = vector.broadcast %69 : vector<1x128xf32> to vector<10x128xf32>
    %75 = arith.mulf %73, %74 : vector<10x128xf32>
    %c0_21 = arith.constant 0 : index
    %c0_22 = arith.constant 0 : index
    %76 = vector.load %arg6[%c0_21, %c0_22] : memref<32x10xbf16, #tpu.memory_space<vmem>>, vector<32x10xbf16>
    %77 = arith.truncf %75 : vector<10x128xf32> to vector<10x128xbf16>
    %cst_23 = arith.constant dense<0.000000e+00> : vector<32x128xf32>
    %78 = tpu.matmul %76, %77, %cst_23 {dimension_numbers = #tpu.dot_dimension_numbers<[1], [0], [0], [1], [0, 0, 1, 1], [], []>} : vector<32x10xbf16>, vector<10x128xbf16>, vector<32x128xf32> -> vector<32x128xf32>
    %c0_24 = arith.constant 0 : index
    %c0_25 = arith.constant 0 : index
    %79 = vector.load %arg7[%c0_24, %c0_25] : memref<32x6xbf16, #tpu.memory_space<vmem>>, vector<32x6xbf16>
    %c0_26 = arith.constant 0 : index
    %c0_27 = arith.constant 0 : index
    %c0_28 = arith.constant 0 : index
    %80 = vector.load %arg4[%c0_26, %c0_27, %c0_28] : memref<1x6x128xbf16, #tpu.memory_space<vmem>>, vector<1x6x128xbf16>
    %81 = vector.shape_cast %80 : vector<1x6x128xbf16> to vector<6x128xbf16>
    %cst_29 = arith.constant dense<0.000000e+00> : vector<32x128xf32>
    %82 = tpu.matmul %79, %81, %cst_29 {dimension_numbers = #tpu.dot_dimension_numbers<[1], [0], [0], [1], [0, 0, 1, 1], [], []>} : vector<32x6xbf16>, vector<6x128xbf16>, vector<32x128xf32> -> vector<32x128xf32>
    %83 = arith.addf %78, %82 : vector<32x128xf32>
    %c0_30 = arith.constant 0 : index
    %c0_31 = arith.constant 0 : index
    %84 = vector.load %arg8[%c0_30, %c0_31] : memref<32x1xf32, #tpu.memory_space<vmem>>, vector<32x1xf32>
    %85 = vector.broadcast %84 : vector<32x1xf32> to vector<32x128xf32>
    %86 = arith.addf %83, %85 : vector<32x128xf32>
    %cst_32 = arith.constant 0.000000e+00 : f32
    %87 = vector.broadcast %cst_32 : f32 to vector<32x128xf32>
    %88 = arith.maximumf %86, %87 : vector<32x128xf32>
    %c0_33 = arith.constant 0 : index
    %c0_34 = arith.constant 0 : index
    %89 = vector.load %arg9[%c0_33, %c0_34] : memref<24x32xbf16, #tpu.memory_space<vmem>>, vector<24x32xbf16>
    %c0_35 = arith.constant 0 : index
    %c0_36 = arith.constant 0 : index
    %90 = vector.load %arg10[%c0_35, %c0_36] : memref<24x1xf32, #tpu.memory_space<vmem>>, vector<24x1xf32>
    %91 = arith.truncf %88 : vector<32x128xf32> to vector<32x128xbf16>
    %cst_37 = arith.constant dense<0.000000e+00> : vector<24x128xf32>
    %92 = tpu.matmul %89, %91, %cst_37 {dimension_numbers = #tpu.dot_dimension_numbers<[1], [0], [0], [1], [0, 0, 1, 1], [], []>} : vector<24x32xbf16>, vector<32x128xbf16>, vector<24x128xf32> -> vector<24x128xf32>
    %93 = vector.broadcast %90 : vector<24x1xf32> to vector<24x128xf32>
    %94 = arith.addf %92, %93 : vector<24x128xf32>
    %cst_38 = arith.constant 0.000000e+00 : f32
    %95 = vector.broadcast %cst_38 : f32 to vector<24x128xf32>
    %96 = arith.maximumf %94, %95 : vector<24x128xf32>
    %c0_39 = arith.constant 0 : index
    %c0_40 = arith.constant 0 : index
    %c0_41 = arith.constant 0 : index
    %97 = vector.load %arg11[%c0_39, %c0_40, %c0_41] : memref<1x24x128xf32, #tpu.memory_space<vmem>>, vector<1x24x128xf32>
    %98 = vector.shape_cast %97 : vector<1x24x128xf32> to vector<24x128xf32>
    %99 = vector.shape_cast %96 : vector<24x128xf32> to vector<1x24x128xf32>
    tpu.vector_store %arg11[%c0_39, %c0_40, %c0_41], %99 {strides = array<i32>} : memref<1x24x128xf32, #tpu.memory_space<vmem>>, vector<1x24x128xf32>,
    return
  }
  func.func @transform_0(%arg0: i32, %arg1: i32) -> (i32, i32, i32) {
    %c0_i32 = arith.constant 0 : i32
    %c0_i32_0 = arith.constant 0 : i32
    return %arg0, %c0_i32, %arg1 : i32, i32, i32
  }
  func.func @transform_1(%arg0: i32, %arg1: i32) -> (i32, i32, i32) {
    %c0_i32 = arith.constant 0 : i32
    %c0_i32_0 = arith.constant 0 : i32
    %c0_i32_1 = arith.constant 0 : i32
    return %arg0, %c0_i32, %c0_i32_0 : i32, i32, i32
  }
  func.func @transform_2(%arg0: i32, %arg1: i32) -> (i32, i32, i32) {
    %c0_i32 = arith.constant 0 : i32
    %c0_i32_0 = arith.constant 0 : i32
    return %arg0, %c0_i32, %arg1 : i32, i32, i32
  }
  func.func @transform_3(%arg0: i32, %arg1: i32) -> (i32, i32, i32) {
    %c0_i32 = arith.constant 0 : i32
    %c0_i32_0 = arith.constant 0 : i32
    %c0_i32_1 = arith.constant 0 : i32
    return %arg0, %c0_i32, %c0_i32_0 : i32, i32, i32
  }
  func.func @transform_4(%arg0: i32, %arg1: i32) -> (i32, i32) {
    %c0_i32 = arith.constant 0 : i32
    %c0_i32_0 = arith.constant 0 : i32
    %c0_i32_1 = arith.constant 0 : i32
    return %c0_i32, %c0_i32_0 : i32, i32
  }
  func.func @transform_5(%arg0: i32, %arg1: i32) -> (i32, i32) {
    %c0_i32 = arith.constant 0 : i32
    %c0_i32_0 = arith.constant 0 : i32
    %c0_i32_1 = arith.constant 0 : i32
    return %c0_i32, %c0_i32_0 : i32, i32
  }
  func.func @transform_6(%arg0: i32, %arg1: i32) -> (i32, i32) {
    %c0_i32 = arith.constant 0 : i32
    %c0_i32_0 = arith.constant 0 : i32
    %c0_i32_1 = arith.constant 0 : i32
    return %c0_i32, %c0_i32_0 : i32, i32
  }
  func.func @transform_7(%arg0: i32, %arg1: i32) -> (i32, i32) {
    %c0_i32 = arith.constant 0 : i32
    %c0_i32_0 = arith.constant 0 : i32
    %c0_i32_1 = arith.constant 0 : i32
    return %c0_i32, %c0_i32_0 : i32, i32
  }
  func.func @transform_8(%arg0: i32, %arg1: i32) -> (i32, i32) {
    %c0_i32 = arith.constant 0 : i32
    %c0_i32_0 = arith.constant 0 : i32
    %c0_i32_1 = arith.constant 0 : i32
    return %c0_i32, %c0_i32_0 : i32, i32
  }
  func.func @transform_9(%arg0: i32, %arg1: i32) -> (i32, i32, i32) {
    %c0_i32 = arith.constant 0 : i32
    %c0_i32_0 = arith.constant 0 : i32
    return %arg0, %c0_i32, %arg1 : i32, i32, i32
  }
}

</mosaic_0001>

<llo_original>
// kernel: tpu_custom_call.1
$region0: #{tpu_custom_call.1}
  #allocation0 [shape = 'u32[]', space=smem, size = 0x4, offset = 0x4, fixed_abs, tag = 'smem constant byte address 0x4 - core index']
  #allocation1 [shape = 'u32[144,128]{1,0:T(1,128)}', space=vmem, size = 0x12000, scoped, tag = 'internal scratch']
  %s0 = inlined_call_operand.vmem [shape: f32[2,3,128], index: 0, kind: input, shape index: {}]
  %s1 = inlined_call_operand.vmem [shape: f32[2,64,3], index: 1, kind: input, shape index: {}]
  %s2 = inlined_call_operand.vmem [shape: bf16[2,6,128], index: 2, kind: input, shape index: {}]
  %s3 = inlined_call_operand.vmem [shape: bf16[2,10,64], index: 3, kind: input, shape index: {}]
  %s4 = inlined_call_operand.vmem [shape: bf16[32,10], index: 4, kind: input, shape index: {}]
  %s5 = inlined_call_operand.vmem [shape: bf16[32,6], index: 5, kind: input, shape index: {}]
  %s6 = inlined_call_operand.vmem [shape: f32[32,1], index: 6, kind: input, shape index: {}]
  %s7 = inlined_call_operand.vmem [shape: bf16[24,32], index: 7, kind: input, shape index: {}]
  %s8 = inlined_call_operand.vmem [shape: f32[24,1], index: 8, kind: input, shape index: {}]
  %s9 = inlined_call_operand.hbm [shape: f32[2,24,128], index: 9, kind: output, shape index: {}]
  %s10 = sld [smem:[#allocation0]]
  $region69: #{tpu_custom_call.1} parent=0
    _
  %s12 = ssub.s32 1, %s10
  %s13 = scalar_select 0, %s12, %s10
  $region1: #{tpu_custom_call.1} parent=0
    #allocation2 [shape = 'u8[24576]{0}', space=vmem, size = 0x6000, scoped, tag = 'output window, operand 0']
    #allocation3 [shape = 's32[2]{0}', space=sflag, size = 0x8, scoped, tag = 'scoped memory for tpu_custom_call.1']
    %14 = vsyncpa [#allocation3], 0
    %s15 = scalar_lea.sflag [#allocation3], 1
    %16 = vsyncpa %s15, 0
    loop: start=0, step=1, limit=4
    $region2: #{tpu_custom_call.1} parent=1 // loop_pre_header
      _
    $region3: #{tpu_custom_call.1} parent=1 // loop_header
      %s18 = sphi 0, %s22
      %p19 = scmp.ge.s32.totalorder %s18, 4
      %s25 = sphi 0, %s37
      %s26 = sphi 0, %s33
      %s27 = sphi 0, %s25
      %s28 = sphi 0, %s26
      %s29 = sphi 0, %s27
      %s30 = sphi 0, %s28
      %s42 = sphi 0, %s44
      %s45 = sphi 0, %s42
      %s46 = sphi 0, %s45
      %s62 = sphi 0, %s46
      %s68 = sphi 0, %s70
      %s71 = sphi 0, %s68
      %s72 = sphi 0, %s71
      %s88 = sphi 0, %s72
      %s96 = sphi 0, %s98
      %s99 = sphi 0, %s96
      %s100 = sphi 0, %s99
      %s116 = sphi 0, %s100
      %s122 = sphi 0, %s124
      %s125 = sphi 0, %s122
      %s126 = sphi 0, %s125
      %s142 = sphi 0, %s126
      %s146 = sphi 0, %s146
      %s148 = sphi 0, %s146
      %s149 = sphi 0, %s148
      %s163 = sphi 0, %s149
      %s167 = sphi 0, %s167
      %s169 = sphi 0, %s167
      %s170 = sphi 0, %s169
      %s184 = sphi 0, %s170
      %s188 = sphi 0, %s188
      %s190 = sphi 0, %s188
      %s191 = sphi 0, %s190
      %s205 = sphi 0, %s191
      %s209 = sphi 0, %s209
      %s211 = sphi 0, %s209
      %s212 = sphi 0, %s211
      %s226 = sphi 0, %s212
      %s230 = sphi 0, %s230
      %s232 = sphi 0, %s230
      %s233 = sphi 0, %s232
      %s247 = sphi 0, %s233
      %s255 = sphi 0, %s257
      %s258 = sphi 0, %s255
      %s259 = sphi 0, %s258
      %s275 = sphi 0, %s259
    $region4: #{tpu_custom_call.1} parent=1 // loop_header_branch
      %21 = sbr.rel (%p19) target = $region8
    $region5: #{tpu_custom_call.1} parent=1 // loop_body
      %s23 = ssub.s32 %s18, 1
      %s24 = ssub.s32 %s18, 2
      %s31 = sadd.s32 1, %s26
      %p32 = scmp.ge.s32.totalorder %s31, 1
      %s33 = scalar_select %p32, 0, %s31
      %s34 = sadd.s32 1, %s25
      %s35 = scalar_select %p32, %s34, %s25
      %p36 = scmp.ge.s32.totalorder %s35, 2
      %s37 = scalar_select %p36, 0, %s35
      %s38 = ssub.s32 %s25, %s37
      %s39 = ssub.s32 %s26, %s33
      %s40 = sor.u32 %s38, %s39
      %p41 = scmp.eq.s32.totalorder %s40, 0
      %s43 = sadd.s32 %s42, 1
      %s44 = scalar_select %p41, %s42, %s43
      %p47 = pneg %p41
      %p48 = scmp.eq.s32.totalorder %s18, 1
      %p49 = por %p47, %p48
      %p50 = scmp.ne.s32.totalorder %s42, %s45
      %p51 = scmp.eq.s32.totalorder %s18, 0
      %p52 = por %p50, %p51
      %p53 = scmp.ne.s32.totalorder %s42, %s45
      %p54 = scmp.eq.s32.totalorder %s23, 1
      %p55 = por %p53, %p54
      %p56 = scmp.ne.s32.totalorder %s45, %s46
      %p57 = scmp.eq.s32.totalorder %s23, 0
      %p58 = por %p56, %p57
      %p59 = scmp.ne.s32.totalorder %s45, %s46
      %p60 = scmp.eq.s32.totalorder %s24, 1
      %p61 = por %p59, %p60
      %p63 = scmp.ne.s32.totalorder %s46, %s62
      %p64 = scmp.eq.s32.totalorder %s24, 0
      %p65 = por %p63, %p64
      %s66 = ssub.s32 %s25, %s37
      %p67 = scmp.eq.s32.totalorder %s66, 0
      %s69 = sadd.s32 %s68, 1
      %s70 = scalar_select %p67, %s68, %s69
      %p73 = pneg %p67
      %p74 = scmp.eq.s32.totalorder %s18, 1
      %p75 = por %p73, %p74
      %p76 = scmp.ne.s32.totalorder %s68, %s71
      %p77 = scmp.eq.s32.totalorder %s18, 0
      %p78 = por %p76, %p77
      %p79 = scmp.ne.s32.totalorder %s68, %s71
      %p80 = scmp.eq.s32.totalorder %s23, 1
      %p81 = por %p79, %p80
      %p82 = scmp.ne.s32.totalorder %s71, %s72
      %p83 = scmp.eq.s32.totalorder %s23, 0
      %p84 = por %p82, %p83
      %p85 = scmp.ne.s32.totalorder %s71, %s72
      %p86 = scmp.eq.s32.totalorder %s24, 1
      %p87 = por %p85, %p86
      %p89 = scmp.ne.s32.totalorder %s72, %s88
      %p90 = scmp.eq.s32.totalorder %s24, 0
      %p91 = por %p89, %p90
      %s92 = ssub.s32 %s25, %s37
      %s93 = ssub.s32 %s26, %s33
      %s94 = sor.u32 %s92, %s93
      %p95 = scmp.eq.s32.totalorder %s94, 0
      %s97 = sadd.s32 %s96, 1
      %s98 = scalar_select %p95, %s96, %s97
      %p101 = pneg %p95
      %p102 = scmp.eq.s32.totalorder %s18, 1
      %p103 = por %p101, %p102
      %p104 = scmp.ne.s32.totalorder %s96, %s99
      %p105 = scmp.eq.s32.totalorder %s18, 0
      %p106 = por %p104, %p105
      %p107 = scmp.ne.s32.totalorder %s96, %s99
      %p108 = scmp.eq.s32.totalorder %s23, 1
      %p109 = por %p107, %p108
      %p110 = scmp.ne.s32.totalorder %s99, %s100
      %p111 = scmp.eq.s32.totalorder %s23, 0
      %p112 = por %p110, %p111
      %p113 = scmp.ne.s32.totalorder %s99, %s100
      %p114 = scmp.eq.s32.totalorder %s24, 1
      %p115 = por %p113, %p114
      %p117 = scmp.ne.s32.totalorder %s100, %s116
      %p118 = scmp.eq.s32.totalorder %s24, 0
      %p119 = por %p117, %p118
      %s120 = ssub.s32 %s25, %s37
      %p121 = scmp.eq.s32.totalorder %s120, 0
      %s123 = sadd.s32 %s122, 1
      %s124 = scalar_select %p121, %s122, %s123
      %p127 = pneg %p121
      %p128 = scmp.eq.s32.totalorder %s18, 1
      %p129 = por %p127, %p128
      %p130 = scmp.ne.s32.totalorder %s122, %s125
      %p131 = scmp.eq.s32.totalorder %s18, 0
      %p132 = por %p130, %p131
      %p133 = scmp.ne.s32.totalorder %s122, %s125
      %p134 = scmp.eq.s32.totalorder %s23, 1
      %p135 = por %p133, %p134
      %p136 = scmp.ne.s32.totalorder %s125, %s126
      %p137 = scmp.eq.s32.totalorder %s23, 0
      %p138 = por %p136, %p137
      %p139 = scmp.ne.s32.totalorder %s125, %s126
      %p140 = scmp.eq.s32.totalorder %s24, 1
      %p141 = por %p139, %p140
      %p143 = scmp.ne.s32.totalorder %s126, %s142
      %p144 = scmp.eq.s32.totalorder %s24, 0
      %p145 = por %p143, %p144
      %s147 = sadd.s32 %s146, 1
      %p150 = scmp.eq.s32.totalorder %s18, 1
      %p151 = scmp.ne.s32.totalorder %s146, %s148
      %p152 = scmp.eq.s32.totalorder %s18, 0
      %p153 = por %p151, %p152
      %p154 = scmp.ne.s32.totalorder %s146, %s148
      %p155 = scmp.eq.s32.totalorder %s23, 1
      %p156 = por %p154, %p155
      %p157 = scmp.ne.s32.totalorder %s148, %s149
      %p158 = scmp.eq.s32.totalorder %s23, 0
      %p159 = por %p157, %p158
      %p160 = scmp.ne.s32.totalorder %s148, %s149
      %p161 = scmp.eq.s32.totalorder %s24, 1
      %p162 = por %p160, %p161
      %p164 = scmp.ne.s32.totalorder %s149, %s163
      %p165 = scmp.eq.s32.totalorder %s24, 0
      %p166 = por %p164, %p165
      %s168 = sadd.s32 %s167, 1
      %p171 = scmp.eq.s32.totalorder %s18, 1
      %p172 = scmp.ne.s32.totalorder %s167, %s169
      %p173 = scmp.eq.s32.totalorder %s18, 0
      %p174 = por %p172, %p173
      %p175 = scmp.ne.s32.totalorder %s167, %s169
      %p176 = scmp.eq.s32.totalorder %s23, 1
      %p177 = por %p175, %p176
      %p178 = scmp.ne.s32.totalorder %s169, %s170
      %p179 = scmp.eq.s32.totalorder %s23, 0
      %p180 = por %p178, %p179
      %p181 = scmp.ne.s32.totalorder %s169, %s170
      %p182 = scmp.eq.s32.totalorder %s24, 1
      %p183 = por %p181, %p182
      %p185 = scmp.ne.s32.totalorder %s170, %s184
      %p186 = scmp.eq.s32.totalorder %s24, 0
      %p187 = por %p185, %p186
      %s189 = sadd.s32 %s188, 1
      %p192 = scmp.eq.s32.totalorder %s18, 1
      %p193 = scmp.ne.s32.totalorder %s188, %s190
      %p194 = scmp.eq.s32.totalorder %s18, 0
      %p195 = por %p193, %p194
      %p196 = scmp.ne.s32.totalorder %s188, %s190
      %p197 = scmp.eq.s32.totalorder %s23, 1
      %p198 = por %p196, %p197
      %p199 = scmp.ne.s32.totalorder %s190, %s191
      %p200 = scmp.eq.s32.totalorder %s23, 0
      %p201 = por %p199, %p200
      %p202 = scmp.ne.s32.totalorder %s190, %s191
      %p203 = scmp.eq.s32.totalorder %s24, 1
      %p204 = por %p202, %p203
      %p206 = scmp.ne.s32.totalorder %s191, %s205
      %p207 = scmp.eq.s32.totalorder %s24, 0
      %p208 = por %p206, %p207
      %s210 = sadd.s32 %s209, 1
      %p213 = scmp.eq.s32.totalorder %s18, 1
      %p214 = scmp.ne.s32.totalorder %s209, %s211
      %p215 = scmp.eq.s32.totalorder %s18, 0
      %p216 = por %p214, %p215
      %p217 = scmp.ne.s32.totalorder %s209, %s211
      %p218 = scmp.eq.s32.totalorder %s23, 1
      %p219 = por %p217, %p218
      %p220 = scmp.ne.s32.totalorder %s211, %s212
      %p221 = scmp.eq.s32.totalorder %s23, 0
      %p222 = por %p220, %p221
      %p223 = scmp.ne.s32.totalorder %s211, %s212
      %p224 = scmp.eq.s32.totalorder %s24, 1
      %p225 = por %p223, %p224
      %p227 = scmp.ne.s32.totalorder %s212, %s226
      %p228 = scmp.eq.s32.totalorder %s24, 0
      %p229 = por %p227, %p228
      %s231 = sadd.s32 %s230, 1
      %p234 = scmp.eq.s32.totalorder %s18, 1
      %p235 = scmp.ne.s32.totalorder %s230, %s232
      %p236 = scmp.eq.s32.totalorder %s18, 0
      %p237 = por %p235, %p236
      %p238 = scmp.ne.s32.totalorder %s230, %s232
      %p239 = scmp.eq.s32.totalorder %s23, 1
      %p240 = por %p238, %p239
      %p241 = scmp.ne.s32.totalorder %s232, %s233
      %p242 = scmp.eq.s32.totalorder %s23, 0
      %p243 = por %p241, %p242
      %p244 = scmp.ne.s32.totalorder %s232, %s233
      %p245 = scmp.eq.s32.totalorder %s24, 1
      %p246 = por %p244, %p245
      %p248 = scmp.ne.s32.totalorder %s233, %s247
      %p249 = scmp.eq.s32.totalorder %s24, 0
      %p250 = por %p248, %p249
      %s251 = ssub.s32 %s25, %s37
      %s252 = ssub.s32 %s26, %s33
      %s253 = sor.u32 %s251, %s252
      %p254 = scmp.eq.s32.totalorder %s253, 0
      %s256 = sadd.s32 %s255, 1
      %s257 = scalar_select %p254, %s255, %s256
      %p260 = pneg %p254
      %p261 = scmp.eq.s32.totalorder %s18, 1
      %p262 = por %p260, %p261
      %p263 = scmp.ne.s32.totalorder %s255, %s258
      %p264 = scmp.eq.s32.totalorder %s18, 0
      %p265 = por %p263, %p264
      %p266 = scmp.ne.s32.totalorder %s255, %s258
      %p267 = scmp.eq.s32.totalorder %s23, 1
      %p268 = por %p266, %p267
      %p269 = scmp.ne.s32.totalorder %s258, %s259
      %p270 = scmp.eq.s32.totalorder %s23, 0
      %p271 = por %p269, %p270
      %p272 = scmp.ne.s32.totalorder %s258, %s259
      %p273 = scmp.eq.s32.totalorder %s24, 1
      %p274 = por %p272, %p273
      %p276 = scmp.ne.s32.totalorder %s259, %s275
      %p277 = scmp.eq.s32.totalorder %s24, 0
      %p278 = por %p276, %p277
      %p279 = scmp.le.s32.totalorder 1, %s18
      %p280 = scmp.lt.s32.totalorder %s18, 3
      %p281 = pnand %p279, %p280
      %p282 = pneg %p281
      // Predicated region
      $region9: #{tpu_custom_call.1} parent=5 // pred_check
        _
      $region10: #{tpu_custom_call.1} parent=5 // pred_check_branch
        %284 = sbr.rel (%p281) target = $region12
      $region11: #{tpu_custom_call.1} parent=5 // pred_region
        %s285 = ssub.s32 %s18, 1
        // Predicated region
        $region13: #{tpu_custom_call.1} parent=11 // pred_check
          %p286 = pneg %p159
        $region14: #{tpu_custom_call.1} parent=11 // pred_check_branch
          %288 = sbr.rel (%p286) target = $region16
        $region15: #{tpu_custom_call.1} parent=11 // pred_region
          _
        $region16: #{tpu_custom_call.1} parent=11 // pred_fallthru
          _
        // Predicated region
        $region17: #{tpu_custom_call.1} parent=11 // pred_check
          %p289 = pneg %p180
        $region18: #{tpu_custom_call.1} parent=11 // pred_check_branch
          %291 = sbr.rel (%p289) target = $region20
        $region19: #{tpu_custom_call.1} parent=11 // pred_region
          _
        $region20: #{tpu_custom_call.1} parent=11 // pred_fallthru
          _
        // Predicated region
        $region21: #{tpu_custom_call.1} parent=11 // pred_check
          %p292 = pneg %p201
        $region22: #{tpu_custom_call.1} parent=11 // pred_check_branch
          %294 = sbr.rel (%p292) target = $region24
        $region23: #{tpu_custom_call.1} parent=11 // pred_region
          _
        $region24: #{tpu_custom_call.1} parent=11 // pred_fallthru
          _
        // Predicated region
        $region25: #{tpu_custom_call.1} parent=11 // pred_check
          %p295 = pneg %p222
        $region26: #{tpu_custom_call.1} parent=11 // pred_check_branch
          %297 = sbr.rel (%p295) target = $region28
        $region27: #{tpu_custom_call.1} parent=11 // pred_region
          _
        $region28: #{tpu_custom_call.1} parent=11 // pred_fallthru
          _
        // Predicated region
        $region29: #{tpu_custom_call.1} parent=11 // pred_check
          %p298 = pneg %p243
        $region30: #{tpu_custom_call.1} parent=11 // pred_check_branch
          %300 = sbr.rel (%p298) target = $region32
        $region31: #{tpu_custom_call.1} parent=11 // pred_region
          _
        $region32: #{tpu_custom_call.1} parent=11 // pred_fallthru
          _
      $region12: #{tpu_custom_call.1} parent=5 // pred_fallthru
        _
      %p301 = scmp.lt.s32.totalorder %s18, 2
      // Predicated region
      $region33: #{tpu_custom_call.1} parent=5 // pred_check
        %p302 = pneg %p301
      $region34: #{tpu_custom_call.1} parent=5 // pred_check_branch
        %304 = sbr.rel (%p302) target = $region36
      $region35: #{tpu_custom_call.1} parent=5 // pred_region
        // Predicated region
        $region37: #{tpu_custom_call.1} parent=35 // pred_check
          %p305 = pneg %p52
        $region38: #{tpu_custom_call.1} parent=35 // pred_check_branch
          %307 = sbr.rel (%p305) target = $region40
        $region39: #{tpu_custom_call.1} parent=35 // pred_region
          %p308 = scmp.lt.s32.totalorder %s25, 1
          %s309 = scalar_select %p308, %s25, 1
          %p310 = scmp.lt.s32.totalorder %s26, 0
          %s311 = scalar_select %p310, %s26, 0
          %s312 = sadd.s32 %s311, %s309
          %s313 = smul.addr %s312, 4
          %s314 = scalar_lea.vmem %s0, %s313
        $region40: #{tpu_custom_call.1} parent=35 // pred_fallthru
          _
        // Predicated region
        $region41: #{tpu_custom_call.1} parent=35 // pred_check
          %p315 = pneg %p78
        $region42: #{tpu_custom_call.1} parent=35 // pred_check_branch
          %317 = sbr.rel (%p315) target = $region44
        $region43: #{tpu_custom_call.1} parent=35 // pred_region
          %p318 = scmp.lt.s32.totalorder %s25, 1
          %s319 = scalar_select %p318, %s25, 1
          %s320 = smul.addr %s319, 8
          %s321 = smul.addr %s320, 8
          %s322 = scalar_lea.vmem %s1, %s321
        $region44: #{tpu_custom_call.1} parent=35 // pred_fallthru
          _
        // Predicated region
        $region45: #{tpu_custom_call.1} parent=35 // pred_check
          %p323 = pneg %p106
        $region46: #{tpu_custom_call.1} parent=35 // pred_check_branch
          %325 = sbr.rel (%p323) target = $region48
        $region47: #{tpu_custom_call.1} parent=35 // pred_region
          %p326 = scmp.lt.s32.totalorder %s25, 1
          %s327 = scalar_select %p326, %s25, 1
          %p328 = scmp.lt.s32.totalorder %s26, 0
          %s329 = scalar_select %p328, %s26, 0
          %s330 = sadd.s32 %s329, %s327
          %s331 = smul.addr %s330, 4
          %s332 = scalar_lea.vmem %s2, %s331
        $region48: #{tpu_custom_call.1} parent=35 // pred_fallthru
          _
        // Predicated region
        $region49: #{tpu_custom_call.1} parent=35 // pred_check
          %p333 = pneg %p132
        $region50: #{tpu_custom_call.1} parent=35 // pred_check_branch
          %335 = sbr.rel (%p333) target = $region52
        $region51: #{tpu_custom_call.1} parent=35 // pred_region
          %p336 = scmp.lt.s32.totalorder %s25, 1
          %s337 = scalar_select %p336, %s25, 1
          %s338 = smul.addr %s337, 2
          %s339 = smul.addr %s338, 4
          %s340 = scalar_lea.vmem %s3, %s339
        $region52: #{tpu_custom_call.1} parent=35 // pred_fallthru
          _
      $region36: #{tpu_custom_call.1} parent=5 // pred_fallthru
        _
      %p341 = scmp.le.s32.totalorder 1, %s18
      %p342 = scmp.lt.s32.totalorder %s18, 3
      %p343 = pnand %p341, %p342
      %p344 = pneg %p343
      // Predicated region
      $region53: #{tpu_custom_call.1} parent=5 // pred_check
        _
      $region54: #{tpu_custom_call.1} parent=5 // pred_check_branch
        %346 = sbr.rel (%p343) target = $region56
      $region55: #{tpu_custom_call.1} parent=5 // pred_region
        %s347 = ssub.s32 %s18, 1
        %p348 = scmp.lt.s32.totalorder %s27, 1
        %s349 = scalar_select %p348, %s27, 1
        %p350 = scmp.lt.s32.totalorder %s28, 0
        %s351 = scalar_select %p350, %s28, 0
        %s352 = sadd.s32 %s351, %s349
        %s353 = smul.addr %s352, 4
        %s354 = scalar_lea.vmem %s0, %s353
        %p355 = pneg %p58
        %p356 = pneg %p55
        %p357 = scmp.lt.s32.totalorder %s27, 1
        %s358 = scalar_select %p357, %s27, 1
        %s359 = smul.addr %s358, 8
        %s360 = smul.addr %s359, 8
        %s361 = scalar_lea.vmem %s1, %s360
        %p362 = pneg %p84
        %p363 = pneg %p81
        %p364 = scmp.lt.s32.totalorder %s27, 1
        %s365 = scalar_select %p364, %s27, 1
        %p366 = scmp.lt.s32.totalorder %s28, 0
        %s367 = scalar_select %p366, %s28, 0
        %s368 = sadd.s32 %s367, %s365
        %s369 = smul.addr %s368, 4
        %s370 = scalar_lea.vmem %s2, %s369
        %p371 = pneg %p112
        %p372 = pneg %p109
        %p373 = scmp.lt.s32.totalorder %s27, 1
        %s374 = scalar_select %p373, %s27, 1
        %s375 = smul.addr %s374, 2
        %s376 = smul.addr %s375, 4
        %s377 = scalar_lea.vmem %s3, %s376
        %p378 = pneg %p138
        %p379 = pneg %p135
        %p380 = pneg %p159
        %p381 = pneg %p156
        %p382 = pneg %p180
        %p383 = pneg %p177
        %p384 = pneg %p201
        %p385 = pneg %p198
        %p386 = pneg %p222
        %p387 = pneg %p219
        %p388 = pneg %p243
        %p389 = pneg %p240
        %p390 = pneg %p271
        %p391 = pneg %p268
        %s392 = sand.u32 %s258, 1
        %s393 = scalar_lea.sflag [#allocation3], %s392
        %s394 = sand.u32 %s258, 1
        %s395 = smul.addr %s394, 24
        %s396 = scalar_lea.vmem [#allocation2], %s395
        %p397 = scmp.lt.s32.totalorder %s27, 1
        %s398 = scalar_select %p397, %s27, 1
        %p399 = scmp.lt.s32.totalorder %s28, 0
        %s400 = scalar_select %p399, %s28, 0
        %s401 = sadd.s32 %s400, %s398
        %s402 = smul.addr %s401, 4
        %s403 = scalar_lea.vmem %s0, %s402
        %p404 = scmp.lt.s32.totalorder %s27, 1
        %s405 = scalar_select %p404, %s27, 1
        %s406 = smul.addr %s405, 8
        %s407 = smul.addr %s406, 8
        %s408 = scalar_lea.vmem %s1, %s407
        %p409 = scmp.lt.s32.totalorder %s27, 1
        %s410 = scalar_select %p409, %s27, 1
        %p411 = scmp.lt.s32.totalorder %s28, 0
        %s412 = scalar_select %p411, %s28, 0
        %s413 = sadd.s32 %s412, %s410
        %s414 = smul.addr %s413, 4
        %s415 = scalar_lea.vmem %s2, %s414
        %p416 = scmp.lt.s32.totalorder %s27, 1
        %s417 = scalar_select %p416, %s27, 1
        %s418 = smul.addr %s417, 2
        %s419 = smul.addr %s418, 4
        %s420 = scalar_lea.vmem %s3, %s419
        %v422 = vld [vmem:[%s403] sm:$0x7]
        %v423 = vld [vmem:[%s408] sm:$0xff]
        %v424 = vld [vmem:[%s408 + $0x8] sm:$0xff]
        %v425 = vld [vmem:[%s408 + $0x10] sm:$0xff]
        %v426 = vld [vmem:[%s408 + $0x18] sm:$0xff]
        %v427 = vld [vmem:[%s408 + $0x20] sm:$0xff]
        %v428 = vld [vmem:[%s408 + $0x28] sm:$0xff]
        %v429 = vld [vmem:[%s408 + $0x30] sm:$0xff]
        %v430 = vld [vmem:[%s408 + $0x38] sm:$0xff]
        %432 = vset.pattern.permute.xlu0 0
        %433 = vperm.xlu0 %432, %v423
        %v434 = vpop.permute.xlu0 %433
        %437 = vset.pattern.permute.xlu0 0
        %438 = vperm.xlu0 %437, %v424
        %v439 = vpop.permute.xlu0 %438
        %442 = vset.pattern.permute.xlu0 0
        %443 = vperm.xlu0 %442, %v425
        %v444 = vpop.permute.xlu0 %443
        %447 = vset.pattern.permute.xlu0 0
        %448 = vperm.xlu0 %447, %v426
        %v449 = vpop.permute.xlu0 %448
        %452 = vset.pattern.permute.xlu0 0
        %453 = vperm.xlu0 %452, %v427
        %v454 = vpop.permute.xlu0 %453
        %457 = vset.pattern.permute.xlu0 0
        %458 = vperm.xlu0 %457, %v428
        %v459 = vpop.permute.xlu0 %458
        %462 = vset.pattern.permute.xlu0 0
        %463 = vperm.xlu0 %462, %v429
        %v464 = vpop.permute.xlu0 %463
        %467 = vset.pattern.permute.xlu0 0
        %468 = vperm.xlu0 %467, %v430
        %v469 = vpop.permute.xlu0 %468
        %v471 = vlaneseq
        %v472 = vshrl.u32 %v471, 7
        %v473 = vsub.s32 0, %v472
        %v474 = vrot.slane %v422, %v473
        %v475 = vsub.f32 %v434, %v474
        %v476 = vsub.f32 %v439, %v474
        %v477 = vsub.f32 %v444, %v474
        %v478 = vsub.f32 %v449, %v474
        %v479 = vsub.f32 %v454, %v474
        %v480 = vsub.f32 %v459, %v474
        %v481 = vsub.f32 %v464, %v474
        %v482 = vsub.f32 %v469, %v474
        %v483 = vmul.f32 %v475, %v475
        %v484 = vmul.f32 %v476, %v476
        %v485 = vmul.f32 %v477, %v477
        %v486 = vmul.f32 %v478, %v478
        %v487 = vmul.f32 %v479, %v479
        %v488 = vmul.f32 %v480, %v480
        %v489 = vmul.f32 %v481, %v481
        %v490 = vmul.f32 %v482, %v482
        %491 = vset.pattern.permute.xlu0 1
        %492 = vperm.xlu0 %491, %v423
        %v493 = vpop.permute.xlu0 %492
        %495 = vset.pattern.permute.xlu0 1
        %496 = vperm.xlu0 %495, %v424
        %v497 = vpop.permute.xlu0 %496
        %499 = vset.pattern.permute.xlu0 1
        %500 = vperm.xlu0 %499, %v425
        %v501 = vpop.permute.xlu0 %500
        %503 = vset.pattern.permute.xlu0 1
        %504 = vperm.xlu0 %503, %v426
        %v505 = vpop.permute.xlu0 %504
        %507 = vset.pattern.permute.xlu0 1
        %508 = vperm.xlu0 %507, %v427
        %v509 = vpop.permute.xlu0 %508
        %511 = vset.pattern.permute.xlu0 1
        %512 = vperm.xlu0 %511, %v428
        %v513 = vpop.permute.xlu0 %512
        %515 = vset.pattern.permute.xlu0 1
        %516 = vperm.xlu0 %515, %v429
        %v517 = vpop.permute.xlu0 %516
        %519 = vset.pattern.permute.xlu0 1
        %520 = vperm.xlu0 %519, %v430
        %v521 = vpop.permute.xlu0 %520
        %v523 = vlaneseq
        %v524 = vshrl.u32 %v523, 7
        %v525 = vsub.s32 1, %v524
        %v526 = vrot.slane %v422, %v525
        %v527 = vsub.f32 %v493, %v526
        %v528 = vsub.f32 %v497, %v526
        %v529 = vsub.f32 %v501, %v526
        %v530 = vsub.f32 %v505, %v526
        %v531 = vsub.f32 %v509, %v526
        %v532 = vsub.f32 %v513, %v526
        %v533 = vsub.f32 %v517, %v526
        %v534 = vsub.f32 %v521, %v526
        %v535 = vmul.f32 %v527, %v527
        %v536 = vmul.f32 %v528, %v528
        %v537 = vmul.f32 %v529, %v529
        %v538 = vmul.f32 %v530, %v530
        %v539 = vmul.f32 %v531, %v531
        %v540 = vmul.f32 %v532, %v532
        %v541 = vmul.f32 %v533, %v533
        %v542 = vmul.f32 %v534, %v534
        %v543 = vadd.f32 %v483, %v535
        %v544 = vadd.f32 %v484, %v536
        %v545 = vadd.f32 %v485, %v537
        %v546 = vadd.f32 %v486, %v538
        %v547 = vadd.f32 %v487, %v539
        %v548 = vadd.f32 %v488, %v540
        %v549 = vadd.f32 %v489, %v541
        %v550 = vadd.f32 %v490, %v542
        %551 = vset.pattern.permute.xlu0 2
        %552 = vperm.xlu0 %551, %v423
        %v553 = vpop.permute.xlu0 %552
        %555 = vset.pattern.permute.xlu0 2
        %556 = vperm.xlu0 %555, %v424
        %v557 = vpop.permute.xlu0 %556
        %559 = vset.pattern.permute.xlu0 2
        %560 = vperm.xlu0 %559, %v425
        %v561 = vpop.permute.xlu0 %560
        %563 = vset.pattern.permute.xlu0 2
        %564 = vperm.xlu0 %563, %v426
        %v565 = vpop.permute.xlu0 %564
        %567 = vset.pattern.permute.xlu0 2
        %568 = vperm.xlu0 %567, %v427
        %v569 = vpop.permute.xlu0 %568
        %571 = vset.pattern.permute.xlu0 2
        %572 = vperm.xlu0 %571, %v428
        %v573 = vpop.permute.xlu0 %572
        %575 = vset.pattern.permute.xlu0 2
        %576 = vperm.xlu0 %575, %v429
        %v577 = vpop.permute.xlu0 %576
        %579 = vset.pattern.permute.xlu0 2
        %580 = vperm.xlu0 %579, %v430
        %v581 = vpop.permute.xlu0 %580
        %v583 = vlaneseq
        %v584 = vshrl.u32 %v583, 7
        %v585 = vsub.s32 2, %v584
        %v586 = vrot.slane %v422, %v585
        %v587 = vsub.f32 %v553, %v586
        %v588 = vsub.f32 %v557, %v586
        %v589 = vsub.f32 %v561, %v586
        %v590 = vsub.f32 %v565, %v586
        %v591 = vsub.f32 %v569, %v586
        %v592 = vsub.f32 %v573, %v586
        %v593 = vsub.f32 %v577, %v586
        %v594 = vsub.f32 %v581, %v586
        %v595 = vmul.f32 %v587, %v587
        %v596 = vmul.f32 %v588, %v588
        %v597 = vmul.f32 %v589, %v589
        %v598 = vmul.f32 %v590, %v590
        %v599 = vmul.f32 %v591, %v591
        %v600 = vmul.f32 %v592, %v592
        %v601 = vmul.f32 %v593, %v593
        %v602 = vmul.f32 %v594, %v594
        %v603 = vadd.f32 %v543, %v595
        %v604 = vadd.f32 %v544, %v596
        %v605 = vadd.f32 %v545, %v597
        %v606 = vadd.f32 %v546, %v598
        %v607 = vadd.f32 %v547, %v599
        %v608 = vadd.f32 %v548, %v600
        %v609 = vadd.f32 %v549, %v601
        %v610 = vadd.f32 %v550, %v602
        %v611 = vmin.f32 %v603, %v607
        %v612 = vmin.f32 %v604, %v608
        %v613 = vmin.f32 %v605, %v609
        %v614 = vmin.f32 %v606, %v610
        %v615 = vmin.f32 %v611, %v612
        %v616 = vmin.f32 %v613, %v614
        %v617 = vmin.f32 %v615, %v616
        %v618 = vrot.slane %v617, 4
        %v619 = vmin.f32 %v617, %v618
        %v620 = vrot.slane %v619, 2
        %v621 = vmin.f32 %v619, %v620
        %v622 = vrot.slane %v621, 1
        %v623 = vmin.f32 %v621, %v622
        %vm624 = vcmp.eq.f32.partialorder %v603, %v623
        %vm625 = vcmp.eq.f32.partialorder %v604, %v623
        %vm626 = vcmp.eq.f32.partialorder %v605, %v623
        %vm627 = vcmp.eq.f32.partialorder %v606, %v623
        %vm628 = vcmp.eq.f32.partialorder %v607, %v623
        %vm629 = vcmp.eq.f32.partialorder %v608, %v623
        %vm630 = vcmp.eq.f32.partialorder %v609, %v623
        %vm631 = vcmp.eq.f32.partialorder %v610, %v623
        %v632 = vadd.f32 %v623, 1e-08
        %v633 = vrcp.pop %v632
        %v634 = vsel %vm624, %v633, 0.0
        %v635 = vsel %vm625, %v633, 0.0
        %v636 = vsel %vm626, %v633, 0.0
        %v637 = vsel %vm627, %v633, 0.0
        %v638 = vsel %vm628, %v633, 0.0
        %v639 = vsel %vm629, %v633, 0.0
        %v640 = vsel %vm630, %v633, 0.0
        %v641 = vsel %vm631, %v633, 0.0
        %v642 = vadd.f32 %v634, 0.0
        %v643 = vadd.f32 %v635, 0.0
        %v644 = vadd.f32 %v636, 0.0
        %v645 = vadd.f32 %v637, 0.0
        %v646 = vadd.f32 %v638, 0.0
        %v647 = vadd.f32 %v639, 0.0
        %v648 = vadd.f32 %v640, 0.0
        %v649 = vadd.f32 %v641, 0.0
        %v650 = vadd.f32 %v633, 0.0
        %v651 = vsel %vm624, 1e+30, %v603
        %v652 = vsel %vm625, 1e+30, %v604
        %v653 = vsel %vm626, 1e+30, %v605
        %v654 = vsel %vm627, 1e+30, %v606
        %v655 = vsel %vm628, 1e+30, %v607
        %v656 = vsel %vm629, 1e+30, %v608
        %v657 = vsel %vm630, 1e+30, %v609
        %v658 = vsel %vm631, 1e+30, %v610
        %v659 = vmin.f32 %v651, %v655
        %v660 = vmin.f32 %v652, %v656
        %v661 = vmin.f32 %v653, %v657
        %v662 = vmin.f32 %v654, %v658
        %v663 = vmin.f32 %v659, %v660
        %v664 = vmin.f32 %v661, %v662
        %v665 = vmin.f32 %v663, %v664
        %v666 = vrot.slane %v665, 4
        %v667 = vmin.f32 %v665, %v666
        %v668 = vrot.slane %v667, 2
        %v669 = vmin.f32 %v667, %v668
        %v670 = vrot.slane %v669, 1
        %v671 = vmin.f32 %v669, %v670
        %vm672 = vcmp.eq.f32.partialorder %v651, %v671
        %vm673 = vcmp.eq.f32.partialorder %v652, %v671
        %vm674 = vcmp.eq.f32.partialorder %v653, %v671
        %vm675 = vcmp.eq.f32.partialorder %v654, %v671
        %vm676 = vcmp.eq.f32.partialorder %v655, %v671
        %vm677 = vcmp.eq.f32.partialorder %v656, %v671
        %vm678 = vcmp.eq.f32.partialorder %v657, %v671
        %vm679 = vcmp.eq.f32.partialorder %v658, %v671
        %v680 = vadd.f32 %v671, 1e-08
        %v681 = vrcp.pop %v680
        %v682 = vsel %vm672, %v681, 0.0
        %v683 = vsel %vm673, %v681, 0.0
        %v684 = vsel %vm674, %v681, 0.0
        %v685 = vsel %vm675, %v681, 0.0
        %v686 = vsel %vm676, %v681, 0.0
        %v687 = vsel %vm677, %v681, 0.0
        %v688 = vsel %vm678, %v681, 0.0
        %v689 = vsel %vm679, %v681, 0.0
        %v690 = vadd.f32 %v642, %v682
        %v691 = vadd.f32 %v643, %v683
        %v692 = vadd.f32 %v644, %v684
        %v693 = vadd.f32 %v645, %v685
        %v694 = vadd.f32 %v646, %v686
        %v695 = vadd.f32 %v647, %v687
        %v696 = vadd.f32 %v648, %v688
        %v697 = vadd.f32 %v649, %v689
        %v698 = vadd.f32 %v650, %v681
        %v699 = vsel %vm672, 1e+30, %v651
        %v700 = vsel %vm673, 1e+30, %v652
        %v701 = vsel %vm674, 1e+30, %v653
        %v702 = vsel %vm675, 1e+30, %v654
        %v703 = vsel %vm676, 1e+30, %v655
        %v704 = vsel %vm677, 1e+30, %v656
        %v705 = vsel %vm678, 1e+30, %v657
        %v706 = vsel %vm679, 1e+30, %v658
        %v707 = vmin.f32 %v699, %v703
        %v708 = vmin.f32 %v700, %v704
        %v709 = vmin.f32 %v701, %v705
        %v710 = vmin.f32 %v702, %v706
        %v711 = vmin.f32 %v707, %v708
        %v712 = vmin.f32 %v709, %v710
        %v713 = vmin.f32 %v711, %v712
        %v714 = vrot.slane %v713, 4
        %v715 = vmin.f32 %v713, %v714
        %v716 = vrot.slane %v715, 2
        %v717 = vmin.f32 %v715, %v716
        %v718 = vrot.slane %v717, 1
        %v719 = vmin.f32 %v717, %v718
        %vm720 = vcmp.eq.f32.partialorder %v699, %v719
        %vm721 = vcmp.eq.f32.partialorder %v700, %v719
        %vm722 = vcmp.eq.f32.partialorder %v701, %v719
        %vm723 = vcmp.eq.f32.partialorder %v702, %v719
        %vm724 = vcmp.eq.f32.partialorder %v703, %v719
        %vm725 = vcmp.eq.f32.partialorder %v704, %v719
        %vm726 = vcmp.eq.f32.partialorder %v705, %v719
        %vm727 = vcmp.eq.f32.partialorder %v706, %v719
        %v728 = vadd.f32 %v719, 1e-08
        %v729 = vrcp.pop %v728
        %v730 = vsel %vm720, %v729, 0.0
        %v731 = vsel %vm721, %v729, 0.0
        %v732 = vsel %vm722, %v729, 0.0
        %v733 = vsel %vm723, %v729, 0.0
        %v734 = vsel %vm724, %v729, 0.0
        %v735 = vsel %vm725, %v729, 0.0
        %v736 = vsel %vm726, %v729, 0.0
        %v737 = vsel %vm727, %v729, 0.0
        %v738 = vadd.f32 %v690, %v730
        %v739 = vadd.f32 %v691, %v731
        %v740 = vadd.f32 %v692, %v732
        %v741 = vadd.f32 %v693, %v733
        %v742 = vadd.f32 %v694, %v734
        %v743 = vadd.f32 %v695, %v735
        %v744 = vadd.f32 %v696, %v736
        %v745 = vadd.f32 %v697, %v737
        %v746 = vadd.f32 %v698, %v729
        %v747 = vrcp.pop %v746
        %v748 = vld [vmem:[%s420] sm:$0xf]
        %v749 = vld [vmem:[%s420 + $0x4] sm:$0x1]
        %v750 = vpack.c.bf16 %v739, %v738
        %v751 = vpack.c.bf16 %v741, %v740
        %v752 = vpack.c.bf16 %v743, %v742
        %v753 = vpack.c.bf16 %v745, %v744
        %v756 = vunpack.c.l.b16 %v748
        %v757 = vunpack.c.l.b16 %v749
        %v758 = vpack.c.b16 %v757, %v756
        %vm759 = vcmask 523264
        %v761 = vsel %vm759, %v758, 0
        %763 = vmatprep.subr.bf16.mxu0 0
        %764 = vmatpush1.bf16.msra.mxu0 %v750
        %765 = vmatprep.subr.bf16.mxu0 0
        %766 = vmatpush1.bf16.msra.mxu0 %v751
        %767 = vmatprep.subr.bf16.mxu0 0
        %768 = vmatpush1.bf16.msra.mxu0 %v752
        %769 = vmatprep.subr.bf16.mxu0 0
        %770 = vmatpush1.bf16.msra.mxu0 %v753
        %771 = vmatprep.subr.bf16.mxu0 0
        %772 = vmatpush1.bf16.msra.mxu0 0
        %773 = vmatprep.subr.bf16.mxu0 0
        %774 = vmatpush1.bf16.msra.mxu0 0
        %775 = vmatprep.subr.bf16.mxu0 0
        %776 = vmatpush1.bf16.msra.mxu0 0
        %777 = vmatprep.subr.bf16.mxu0 0
        %778 = vmatpush1.bf16.msra.mxu0 0
        %779 = vmatprep.subr.bf16.mxu0 0
        %780 = vmatpush1.bf16.msra.mxu0 0
        %781 = vmatprep.subr.bf16.mxu0 0
        %782 = vmatpush1.bf16.msra.mxu0 0
        %783 = vmatprep.subr.bf16.mxu0 0
        %784 = vmatpush1.bf16.msra.mxu0 0
        %785 = vmatprep.subr.bf16.mxu0 0
        %786 = vmatpush1.bf16.msra.mxu0 0
        %787 = vmatprep.subr.bf16.mxu0 0
        %788 = vmatpush1.bf16.msra.mxu0 0
        %789 = vmatprep.subr.bf16.mxu0 0
        %790 = vmatpush1.bf16.msra.mxu0 0
        %791 = vmatprep.subr.bf16.mxu0 0
        %792 = vmatpush1.bf16.msra.mxu0 0
        %793 = vmatprep.subr.bf16.mxu0 0
        %794 = vmatpush1.bf16.msra.mxu0 0
        %795 = vmatprep.mubr.bf16.mxu0 0
        %796 = vmatmul.mubr.bf16.gmra.mrb[0].mxu0 %v761
        %v797 = vpop.f32.mrb[0].mxu0
        %v798 = vadd.f32 0.0, %v797
        %v799 = vpop.f32.mrb[0].mxu0
        %v800 = vpop.f32.mrb[0].mxu0
        %v801 = vadd.f32 0.0, %v800
        %v802 = vpop.f32.mrb[0].mxu0
        %803 = vdwg.mxu0
        %v804 = vmul.f32 %v798, %v747
        %v805 = vmul.f32 %v801, %v747
        %v806 = vld [vmem:[%s4] sm:$0xf]
        %v807 = vld [vmem:[%s4 + $0x4] sm:$0xf]
        %v808 = vld [vmem:[%s4 + $0x8] sm:$0xf]
        %v809 = vld [vmem:[%s4 + $0xc] sm:$0xf]
        %v810 = vpack.c.bf16 %v805, %v804
        %v811 = vld [vmem:[%s5] sm:$0xf]
        %v812 = vld [vmem:[%s5 + $0x4] sm:$0xf]
        %v813 = vld [vmem:[%s5 + $0x8] sm:$0xf]
        %v814 = vld [vmem:[%s5 + $0xc] sm:$0xf]
        %v815 = vld [vmem:[%s415] sm:$0x7]
        %v820 = vunpack.c.l.b16 %v811
        %v821 = vunpack.c.l.b16 %v812
        %v822 = vunpack.c.l.b16 %v813
        %v823 = vunpack.c.l.b16 %v814
        %v824 = vpack.c.b16 %v821, %v820
        %v825 = vpack.c.b16 %v823, %v822
        %vm826 = vcmask 48128
        %v828 = vsel %vm826, %v824, 0
        %v831 = vsel %vm826, %v825, 0
        %vm833 = vcmask 1042432
        %v835 = vsel %vm833, %v815, 0
        %837 = vmatprep.subr.bf16.mxu0 0
        %838 = vmatpush1.bf16.msra.mxu0 %v835
        %839 = vmatprep.subr.bf16.mxu0 0
        %840 = vmatpush1.bf16.msra.mxu0 0
        %841 = vmatprep.subr.bf16.mxu0 0
        %842 = vmatpush1.bf16.msra.mxu0 0
        %843 = vmatprep.subr.bf16.mxu0 0
        %844 = vmatpush1.bf16.msra.mxu0 0
        %845 = vmatprep.subr.bf16.mxu0 0
        %846 = vmatpush1.bf16.msra.mxu0 0
        %847 = vmatprep.subr.bf16.mxu0 0
        %848 = vmatpush1.bf16.msra.mxu0 0
        %849 = vmatprep.subr.bf16.mxu0 0
        %850 = vmatpush1.bf16.msra.mxu0 0
        %851 = vmatprep.subr.bf16.mxu0 0
        %852 = vmatpush1.bf16.msra.mxu0 0
        %853 = vmatprep.subr.bf16.mxu0 0
        %854 = vmatpush1.bf16.msra.mxu0 0
        %855 = vmatprep.subr.bf16.mxu0 0
        %856 = vmatpush1.bf16.msra.mxu0 0
        %857 = vmatprep.subr.bf16.mxu0 0
        %858 = vmatpush1.bf16.msra.mxu0 0
        %859 = vmatprep.subr.bf16.mxu0 0
        %860 = vmatpush1.bf16.msra.mxu0 0
        %861 = vmatprep.subr.bf16.mxu0 0
        %862 = vmatpush1.bf16.msra.mxu0 0
        %863 = vmatprep.subr.bf16.mxu0 0
        %864 = vmatpush1.bf16.msra.mxu0 0
        %865 = vmatprep.subr.bf16.mxu0 0
        %866 = vmatpush1.bf16.msra.mxu0 0
        %867 = vmatprep.subr.bf16.mxu0 0
        %868 = vmatpush1.bf16.msra.mxu0 0
        %869 = vmatprep.mubr.bf16.mxu0 0
        %870 = vmatmul.mubr.bf16.gmra.mrb[0].mxu0 %v828
        %v871 = vpop.f32.mrb[0].mxu0
        %v872 = vadd.f32 0.0, %v871
        %v873 = vpop.f32.mrb[0].mxu0
        %v874 = vpop.f32.mrb[0].mxu0
        %v875 = vadd.f32 0.0, %v874
        %v876 = vpop.f32.mrb[0].mxu0
        %877 = vmatprep.mubr.bf16.mxu0 0
        %878 = vmatmul.mubr.bf16.gmra.mrb[0].mxu0 %v831
        %v879 = vpop.f32.mrb[0].mxu0
        %v880 = vadd.f32 0.0, %v879
        %v881 = vpop.f32.mrb[0].mxu0
        %v882 = vpop.f32.mrb[0].mxu0
        %v883 = vadd.f32 0.0, %v882
        %v884 = vpop.f32.mrb[0].mxu0
        %885 = vdwg.mxu0
        %v890 = vunpack.c.l.b16 %v806
        %v891 = vunpack.c.l.b16 %v807
        %v892 = vunpack.c.l.b16 %v808
        %v893 = vunpack.c.l.b16 %v809
        %v894 = vpack.c.b16 %v891, %v890
        %v895 = vpack.c.b16 %v893, %v892
        %vm896 = vcmask 80896
        %v898 = vsel %vm896, %v894, 0
        %v901 = vsel %vm896, %v895, 0
        %vm903 = vcmask 1044480
        %v905 = vsel %vm903, %v810, 0
        %907 = vmatprep.subr.bf16.mxu0 0
        %908 = vmatpush1.bf16.msra.mxu0 %v905
        %909 = vmatprep.subr.bf16.mxu0 0
        %910 = vmatpush1.bf16.msra.mxu0 0
        %911 = vmatprep.subr.bf16.mxu0 0
        %912 = vmatpush1.bf16.msra.mxu0 0
        %913 = vmatprep.subr.bf16.mxu0 0
        %914 = vmatpush1.bf16.msra.mxu0 0
        %915 = vmatprep.subr.bf16.mxu0 0
        %916 = vmatpush1.bf16.msra.mxu0 0
        %917 = vmatprep.subr.bf16.mxu0 0
        %918 = vmatpush1.bf16.msra.mxu0 0
        %919 = vmatprep.subr.bf16.mxu0 0
        %920 = vmatpush1.bf16.msra.mxu0 0
        %921 = vmatprep.subr.bf16.mxu0 0
        %922 = vmatpush1.bf16.msra.mxu0 0
        %923 = vmatprep.subr.bf16.mxu0 0
        %924 = vmatpush1.bf16.msra.mxu0 0
        %925 = vmatprep.subr.bf16.mxu0 0
        %926 = vmatpush1.bf16.msra.mxu0 0
        %927 = vmatprep.subr.bf16.mxu0 0
        %928 = vmatpush1.bf16.msra.mxu0 0
        %929 = vmatprep.subr.bf16.mxu0 0
        %930 = vmatpush1.bf16.msra.mxu0 0
        %931 = vmatprep.subr.bf16.mxu0 0
        %932 = vmatpush1.bf16.msra.mxu0 0
        %933 = vmatprep.subr.bf16.mxu0 0
        %934 = vmatpush1.bf16.msra.mxu0 0
        %935 = vmatprep.subr.bf16.mxu0 0
        %936 = vmatpush1.bf16.msra.mxu0 0
        %937 = vmatprep.subr.bf16.mxu0 0
        %938 = vmatpush1.bf16.msra.mxu0 0
        %939 = vmatprep.mubr.bf16.mxu0 0
        %940 = vmatmul.mubr.bf16.gmra.mrb[0].mxu0 %v898
        %v941 = vpop.f32.mrb[0].mxu0
        %v942 = vadd.f32 %v872, %v941
        %v943 = vpop.f32.mrb[0].mxu0
        %v944 = vpop.f32.mrb[0].mxu0
        %v945 = vadd.f32 %v875, %v944
        %v946 = vpop.f32.mrb[0].mxu0
        %947 = vmatprep.mubr.bf16.mxu0 0
        %948 = vmatmul.mubr.bf16.gmra.mrb[0].mxu0 %v901
        %v949 = vpop.f32.mrb[0].mxu0
        %v950 = vadd.f32 %v880, %v949
        %v951 = vpop.f32.mrb[0].mxu0
        %v952 = vpop.f32.mrb[0].mxu0
        %v953 = vadd.f32 %v883, %v952
        %v954 = vpop.f32.mrb[0].mxu0
        %955 = vdwg.mxu0
        %v956 = vld [vmem:[%s6] sm:$0xff]
        %v957 = vld [vmem:[%s6 + $0x8] sm:$0xff]
        %v958 = vld [vmem:[%s6 + $0x10] sm:$0xff]
        %v959 = vld [vmem:[%s6 + $0x18] sm:$0xff]
        %961 = vset.pattern.permute.xlu0 0
        %962 = vperm.xlu0 %961, %v956
        %v963 = vpop.permute.xlu0 %962
        %966 = vset.pattern.permute.xlu0 0
        %967 = vperm.xlu0 %966, %v957
        %v968 = vpop.permute.xlu0 %967
        %971 = vset.pattern.permute.xlu0 0
        %972 = vperm.xlu0 %971, %v958
        %v973 = vpop.permute.xlu0 %972
        %976 = vset.pattern.permute.xlu0 0
        %977 = vperm.xlu0 %976, %v959
        %v978 = vpop.permute.xlu0 %977
        %v980 = vadd.f32 %v942, %v963
        %v981 = vadd.f32 %v945, %v968
        %v982 = vadd.f32 %v950, %v973
        %v983 = vadd.f32 %v953, %v978
        %v984 = vmax.f32 %v980, 0.0
        %v985 = vmax.f32 %v981, 0.0
        %v986 = vmax.f32 %v982, 0.0
        %v987 = vmax.f32 %v983, 0.0
        %v988 = vld [vmem:[%s7] sm:$0xf]
        %v989 = vld [vmem:[%s7 + $0x4] sm:$0xf]
        %v990 = vld [vmem:[%s7 + $0x8] sm:$0xf]
        %v991 = vld [vmem:[%s8] sm:$0xff]
        %v992 = vld [vmem:[%s8 + $0x8] sm:$0xff]
        %v993 = vld [vmem:[%s8 + $0x10] sm:$0xff]
        %v994 = vpack.c.bf16 %v985, %v984
        %v995 = vpack.c.bf16 %v987, %v986
        %997 = vset.pattern.permute.xlu0 0
        %998 = vperm.xlu0 %997, %v991
        %v999 = vpop.permute.xlu0 %998
        %1002 = vset.pattern.permute.xlu0 0
        %1003 = vperm.xlu0 %1002, %v992
        %v1004 = vpop.permute.xlu0 %1003
        %1007 = vset.pattern.permute.xlu0 0
        %1008 = vperm.xlu0 %1007, %v993
        %v1009 = vpop.permute.xlu0 %1008
        %v1014 = vunpack.c.l.b16 %v988
        %v1015 = vunpack.c.l.b16 %v989
        %v1016 = vunpack.c.l.b16 %v990
        %v1017 = vpack.c.b16 %v1015, %v1014
        %v1018 = vpack.c.b16 %v1016, %v1016
        %vm1019 = vcmask 261120
        %v1021 = vsel %vm1019, %v1017, 0
        %v1024 = vsel %vm1019, %v1018, 0
        %1026 = vmatprep.subr.bf16.mxu0 0
        %1027 = vmatpush1.bf16.msra.mxu0 %v994
        %1028 = vmatprep.subr.bf16.mxu0 0
        %1029 = vmatpush1.bf16.msra.mxu0 %v995
        %1030 = vmatprep.subr.bf16.mxu0 0
        %1031 = vmatpush1.bf16.msra.mxu0 0
        %1032 = vmatprep.subr.bf16.mxu0 0
        %1033 = vmatpush1.bf16.msra.mxu0 0
        %1034 = vmatprep.subr.bf16.mxu0 0
        %1035 = vmatpush1.bf16.msra.mxu0 0
        %1036 = vmatprep.subr.bf16.mxu0 0
        %1037 = vmatpush1.bf16.msra.mxu0 0
        %1038 = vmatprep.subr.bf16.mxu0 0
        %1039 = vmatpush1.bf16.msra.mxu0 0
        %1040 = vmatprep.subr.bf16.mxu0 0
        %1041 = vmatpush1.bf16.msra.mxu0 0
        %1042 = vmatprep.subr.bf16.mxu0 0
        %1043 = vmatpush1.bf16.msra.mxu0 0
        %1044 = vmatprep.subr.bf16.mxu0 0
        %1045 = vmatpush1.bf16.msra.mxu0 0
        %1046 = vmatprep.subr.bf16.mxu0 0
        %1047 = vmatpush1.bf16.msra.mxu0 0
        %1048 = vmatprep.subr.bf16.mxu0 0
        %1049 = vmatpush1.bf16.msra.mxu0 0
        %1050 = vmatprep.subr.bf16.mxu0 0
        %1051 = vmatpush1.bf16.msra.mxu0 0
        %1052 = vmatprep.subr.bf16.mxu0 0
        %1053 = vmatpush1.bf16.msra.mxu0 0
        %1054 = vmatprep.subr.bf16.mxu0 0
        %1055 = vmatpush1.bf16.msra.mxu0 0
        %1056 = vmatprep.subr.bf16.mxu0 0
        %1057 = vmatpush1.bf16.msra.mxu0 0
        %1058 = vmatprep.mubr.bf16.mxu0 0
        %1059 = vmatmul.mubr.bf16.gmra.mrb[0].mxu0 %v1021
        %v1060 = vpop.f32.mrb[0].mxu0
        %v1061 = vadd.f32 %v999, %v1060
        %v1062 = vpop.f32.mrb[0].mxu0
        %v1063 = vpop.f32.mrb[0].mxu0
        %v1064 = vadd.f32 %v1004, %v1063
        %v1065 = vpop.f32.mrb[0].mxu0
        %1066 = vmatprep.mubr.bf16.mxu0 0
        %1067 = vmatmul.mubr.bf16.gmra.mrb[0].mxu0 %v1024
        %v1068 = vpop.f32.mrb[0].mxu0
        %v1069 = vadd.f32 %v1009, %v1068
        %v1070 = vpop.f32.mrb[0].mxu0
        %v1071 = vpop.f32.mrb[0].mxu0
        %v1072 = vpop.f32.mrb[0].mxu0
        %1073 = vdwg.mxu0
        %v1074 = vmax.f32 %v1061, 0.0
        %v1075 = vmax.f32 %v1064, 0.0
        %v1076 = vmax.f32 %v1069, 0.0
        %1077 = vst [vmem:[%s396] sm:$0xff] %v1074
        %1078 = vst [vmem:[%s396 + $0x8] sm:$0xff] %v1075
        %1079 = vst [vmem:[%s396 + $0x10] sm:$0xff] %v1076
        %s1080 = sand.u32 %s258, 1
        %s1081 = scalar_lea.sflag [#allocation3], %s1080
        %s1082 = sand.u32 %s258, 1
        %s1083 = smul.addr %s1082, 24
        %s1084 = scalar_lea.vmem [#allocation2], %s1083
        // Predicated region
        $region57: #{tpu_custom_call.1} parent=55 // pred_check
          %p1085 = pneg %p268
        $region58: #{tpu_custom_call.1} parent=55 // pred_check_branch
          %1087 = sbr.rel (%p1085) target = $region60
        $region59: #{tpu_custom_call.1} parent=55 // pred_region
          %s1089 = ssub.s32 384, 384
          %1090 = vsyncadd %s1081, %s1089
          %s1091 = smul.addr %s27, 3
          %s1092 = sadd.s32 %s28, %s1091
          %s1093 = smul.addr %s1092, 128
          %s1094 = scalar_lea.hbm %s9, %s1093
          %s1095 = sshll.u32 %s1084, 4
          %s1096 = int_to_ptr.vmem [resolvable:$true] %s1095
          %1101 = dma.vmem_to_hbm [thread:$0]  %s1096, 384, %s1094, %s1081, 128, 128, 8
        $region60: #{tpu_custom_call.1} parent=55 // pred_fallthru
          _
      $region56: #{tpu_custom_call.1} parent=5 // pred_fallthru
        _
      %p1102 = scmp.le.s32.totalorder 2, %s18
      // Predicated region
      $region61: #{tpu_custom_call.1} parent=5 // pred_check
        %p1103 = pneg %p1102
      $region62: #{tpu_custom_call.1} parent=5 // pred_check_branch
        %1105 = sbr.rel (%p1103) target = $region64
      $region63: #{tpu_custom_call.1} parent=5 // pred_region
        %s1106 = ssub.s32 %s18, 2
        // Predicated region
        $region65: #{tpu_custom_call.1} parent=63 // pred_check
          %p1107 = pneg %p274
        $region66: #{tpu_custom_call.1} parent=63 // pred_check_branch
          %1109 = sbr.rel (%p1107) target = $region68
        $region67: #{tpu_custom_call.1} parent=63 // pred_region
          %s1110 = sand.u32 %s259, 1
          %s1111 = scalar_lea.sflag [#allocation3], %s1110
          %s1112 = sand.u32 %s259, 1
          %s1113 = smul.addr %s1112, 24
          %s1114 = scalar_lea.vmem [#allocation2], %s1113
          %1115 = dma.done %s1111, 384
        $region68: #{tpu_custom_call.1} parent=63 // pred_fallthru
          _
      $region64: #{tpu_custom_call.1} parent=5 // pred_fallthru
        _
    $region6: #{tpu_custom_call.1} parent=1 // loop_footer
      %s22 = sadd.s32 1, %s18
    $region7: #{tpu_custom_call.1} parent=1 // loop_footer_branch
      %17 = sbr.rel target = $region3
    $region8: #{tpu_custom_call.1} parent=1 // loop_exit
      _
    %1116 = vsyncpa [#allocation3], 1
    %s1117 = scalar_lea.sflag [#allocation3], 1
    %1118 = vsyncpa %s1117, 1

</llo_original>
